<compile_context>
chip_gen: v5e
topology: v5e:2x2
jax: 0.10.0
libtpu: 0.0.40
codegen_flags: <defaults>
</compile_context>

<pallas_src>
import functools

import jax
import jax.numpy as jnp
from jax import lax
from jax.experimental import pallas as pl
from jax.experimental.pallas import tpu as pltpu

ALPHA = 1.0      # FocalLoss(alpha=None) -> alpha = 1.0
GAMMA = 2.0      # kernel specializes gamma == 2 (explicit square, no pow)
EPS = 1e-8


def _focal_loss_kernel(x_ref, t_ref, o_ref, acc_ref, *, n_rows, tile_n, steps):
    p = pl.program_id(0)          # parallel slice (maps to a TensorCore on v7x)
    j = pl.program_id(1)          # sequential step within the slice

    @pl.when(j == 0)
    def _():
        acc_ref[...] = jnp.zeros_like(acc_ref)

    x = x_ref[...]                                  # (tile_n, C) logits
    if x.dtype != jnp.float32:
        x = x.astype(jnp.float32)
    t = t_ref[...]                                  # (tile_n, 1) int32 targets

    # Row-wise softmax pieces; only exp is per-element.
    m = jnp.max(x, axis=-1, keepdims=True)          # (tile_n, 1)
    e = jnp.exp(x - m)                              # (tile_n, C)
    denom = jnp.sum(e, axis=-1, keepdims=True)      # (tile_n, 1)

    # Select the target-class exp with a single compare+select (no one-hot mul).
    cls = lax.broadcasted_iota(jnp.int32, x.shape, 1)
    e_t = jnp.sum(jnp.where(cls == t, e, 0.0), axis=-1, keepdims=True)
    p_t = e_t / denom                               # softmax prob of target

    y = 1.0 - p_t
    fl_rows = -ALPHA * (y * y) * jnp.log(p_t + EPS)  # (tile_n, 1)

    # Mask out-of-range rows. Boundary/overhang blocks contain unspecified
    # data; all math above is strictly per-row, so this select is sufficient.
    base = (p * steps + j) * tile_n                  # UNclamped logical base
    row_ids = base + lax.broadcasted_iota(jnp.int32, (tile_n, 1), 0)
    fl_rows = jnp.where(row_ids < n_rows, fl_rows, 0.0)

    acc_ref[...] += jnp.sum(fl_rows)

    # Finalize once per slice: write the partial sum into lane (0,0) of this
    # slice's (8,128) output block (rest zeros).
    @pl.when(j == steps - 1)
    def _():
        r = lax.broadcasted_iota(jnp.int32, o_ref.shape, 0)
        c = lax.broadcasted_iota(jnp.int32, o_ref.shape, 1)
        o_ref[...] = jnp.where((r == 0) & (c == 0), acc_ref[...], 0.0)


def _round_up(x, m):
    return ((x + m - 1) // m) * m


def _default_num_par():
    # 2 TensorCores per chip only on v7x; v5e/v6e have 1.
    try:
        kind = jax.devices()[0].device_kind.lower()
    except Exception:
        return 1
    return 2 if "v7" in kind else 1


def focal_loss(inputs, targets, *, num_par=None,
               vmem_data_budget_bytes=20 * 1024 * 1024):
    """inputs: (N, C) float logits (f32 or bf16); targets: (N,) int class ids.

    Returns the scalar mean focal loss (float32), matching the PyTorch module
    with alpha=None, gamma=2.0, reduction='mean'.
    """
    N, C = inputs.shape
    itemsize = jnp.dtype(inputs.dtype).itemsize
    if num_par is None:
        num_par = _default_num_par()

    # Sub-32-bit dtypes pack along sublanes: 16-row alignment for bf16/f16,
    # 32 for 8-bit, else 8.
    row_align = {4: 8, 2: 16, 1: 32}.get(itemsize, 8)

    # Budget tile_n against the *lane-padded* VMEM footprint of the
    # double-buffered logits + targets blocks (last dims pad to 128 lanes).
    padded_c = pl.cdiv(C, 128) * 128
    per_row_vmem = 2 * (padded_c * itemsize + 128 * 4)     # 2 buffers each
    tile_n = vmem_data_budget_bytes // per_row_vmem
    tile_n = min(tile_n, _round_up(N, row_align))
    tile_n = max(row_align, (tile_n // row_align) * row_align)

    num_tiles = pl.cdiv(N, tile_n)
    num_par = max(1, min(num_par, num_tiles))
    steps = pl.cdiv(num_tiles, num_par)
    last_block = num_tiles - 1

    # Clamp the block index so DMAs never start fully out of bounds; the
    # in-kernel row mask (built from the UNclamped logical index) zeroes any
    # duplicated / partial rows.
    def row_block(p, j):
        return (jnp.minimum(p * steps + j, last_block), 0)

    targets2d = targets.astype(jnp.int32).reshape(N, 1)

    kernel = functools.partial(
        _focal_loss_kernel, n_rows=N, tile_n=tile_n, steps=steps)

    vmem_limit = int(min(48 * 1024 * 1024,
                         max(32 * 1024 * 1024,
                             per_row_vmem * tile_n + 4 * 1024 * 1024)))

    # TODO(synk): when C << 128, pack several rows per 128-lane vreg row with
    # segmented in-kernel reductions to recover lane/EUP utilization; kept
    # per-row here so softmax numerics match the reference exactly.
    out = pl.pallas_call(
        kernel,
        out_shape=jax.ShapeDtypeStruct((8, 128 * num_par), jnp.float32),
        grid_spec=pltpu.PrefetchScalarGridSpec(
            num_scalar_prefetch=0,
            grid=(num_par, steps),
            in_specs=[
                pl.BlockSpec((tile_n, C), row_block),
                pl.BlockSpec((tile_n, 1), row_block),
            ],
            out_specs=pl.BlockSpec((8, 128), lambda p, j: (0, p)),
            scratch_shapes=[pltpu.VMEM((1, 1), jnp.float32)],
        ),
        compiler_params=pltpu.CompilerParams(
            # leading axis parallel -> both v7x TensorCores; inner axis is the
            # sequential accumulation over row tiles.
            dimension_semantics=("parallel", "arbitrary"),
            vmem_limit_bytes=vmem_limit,
        ),
    )(inputs, targets2d)

    # Sum the per-slice partials (everything else in `out` is exact zeros) and
    # normalize by the true element count N*C ('mean' reduction).
    return jnp.sum(out) / jnp.float32(N * C)


def focal_loss_ref(inputs, targets):
    """Pure-JAX reference mirroring the PyTorch module."""
    probs = jax.nn.softmax(inputs.astype(jnp.float32), axis=1)
    one_hot = jax.nn.one_hot(targets, inputs.shape[1], dtype=jnp.float32)
    fl = -ALPHA * (1.0 - probs) ** GAMMA * (one_hot * jnp.log(probs + EPS))
    return jnp.mean(fl)


if __name__ == "__main__":
    key = jax.random.PRNGKey(0)
    k1, k2, k3, k4, k5, k6, k7, k8 = jax.random.split(key, 8)

    # Case 1: small, evenly divisible (batch=16, classes=8).
    N, C = 16, 8
    x1 = jax.random.normal(k1, (N, C), dtype=jnp.float32)
    t1 = jax.random.randint(k2, (N,), 0, C, dtype=jnp.int32)
    l1 = focal_loss(x1, t1)
    jax.block_until_ready(l1)
    r1 = focal_loss_ref(x1, t1)
    assert jnp.allclose(l1, r1, rtol=2e-5, atol=1e-6), (l1, r1)

    # Case 2: ragged N (partial boundary block, no wrapper-side padding).
    N2, C2 = 100, 10
    x2 = jax.random.normal(k3, (N2, C2), dtype=jnp.float32)
    t2 = jax.random.randint(k4, (N2,), 0, C2, dtype=jnp.int32)
    l2 = focal_loss(x2, t2)
    jax.block_until_ready(l2)
    r2 = focal_loss_ref(x2, t2)
    assert jnp.allclose(l2, r2, rtol=2e-5, atol=1e-6), (l2, r2)

    # Case 3: bf16 logits (exercises the 16-row tile alignment path).
    N3, C3 = 37, 10
    x3 = jax.random.normal(k5, (N3, C3), dtype=jnp.bfloat16)
    t3 = jax.random.randint(k6, (N3,), 0, C3, dtype=jnp.int32)
    l3 = focal_loss(x3, t3)
    jax.block_until_ready(l3)
    r3 = focal_loss_ref(x3, t3)
    assert jnp.allclose(l3, r3, rtol=1e-4, atol=1e-6), (l3, r3)

    # Case 4: multi-step accumulation + 2 parallel slices with an overhang
    # block (num_par * steps > num_tiles exercises the clamped index_map).
    N4, C4 = 200, 12
    x4 = jax.random.normal(k7, (N4, C4), dtype=jnp.float32)
    t4 = jax.random.randint(k8, (N4,), 0, C4, dtype=jnp.int32)
    l4 = focal_loss(x4, t4, num_par=2, vmem_data_budget_bytes=16 * 2048)
    jax.block_until_ready(l4)
    r4 = focal_loss_ref(x4, t4)
    assert jnp.allclose(l4, r4, rtol=2e-5, atol=1e-6), (l4, r4)

    print("KERNEL_OK")
</pallas_src>

<mosaic_0001>
module attributes {stable_mosaic.version = 11 : i64} {
  func.func @_focal_loss_kernel(%arg0: i32, %arg1: i32, %arg2: memref<16x8xf32, #tpu.memory_space<vmem>>, %arg3: memref<16x1xi32, #tpu.memory_space<vmem>>, %arg4: memref<8x128xf32, #tpu.memory_space<vmem>>, %arg5: memref<1x1xf32, #tpu.memory_space<vmem>>) attributes {dimension_semantics = [#tpu.dimension_semantics<parallel>, #tpu.dimension_semantics<arbitrary>], iteration_bounds = array<i64: 1, 1>, scalar_prefetch = 0 : i64, scratch_operands = 1 : i64, tpu.core_type = #tpu.core_type<tc>, window_params = [{transform_indices = @transform_0, window_bounds = array<i64: 16, 8>}, {transform_indices = @transform_1, window_bounds = array<i64: 16, 1>}, {transform_indices = @transform_2, window_bounds = array<i64: 8, 128>}]} {
    %c0_i32 = arith.constant 0 : i32
    %0 = arith.cmpi eq, %arg1, %c0_i32 : i32
    %1 = arith.extui %0 : i1 to i32
    %c0_i32_0 = arith.constant 0 : i32
    %2 = arith.cmpi ne, %1, %c0_i32_0 : i32
    scf.if %2 {
      %cst_19 = arith.constant 0.000000e+00 : f32
      %50 = vector.broadcast %cst_19 : f32 to vector<1x1xf32>
      %c0_20 = arith.constant 0 : index
      %c0_21 = arith.constant 0 : index
      %51 = vector.load %arg5[%c0_20, %c0_21] : memref<1x1xf32, #tpu.memory_space<vmem>>, vector<1x1xf32>
      tpu.vector_store %arg5[%c0_20, %c0_21], %50 {strides = array<i32>} : memref<1x1xf32, #tpu.memory_space<vmem>>, vector<1x1xf32>,
    } else {
    }
    %c0 = arith.constant 0 : index
    %c0_1 = arith.constant 0 : index
    %3 = vector.load %arg2[%c0, %c0_1] : memref<16x8xf32, #tpu.memory_space<vmem>>, vector<16x8xf32>
    %c0_2 = arith.constant 0 : index
    %c0_3 = arith.constant 0 : index
    %4 = vector.load %arg3[%c0_2, %c0_3] : memref<16x1xi32, #tpu.memory_space<vmem>>, vector<16x1xi32>
    %cst = arith.constant dense<0xFF800000> : vector<16xf32>
    %5 = vector.multi_reduction <maximumf>, %3, %cst [1] : vector<16x8xf32> to vector<16xf32>
    %6 = vector.shape_cast %5 : vector<16xf32> to vector<16x1xf32>
    %7 = vector.broadcast %6 : vector<16x1xf32> to vector<16x8xf32>
    %8 = arith.subf %3, %7 : vector<16x8xf32>
    %9 = math.exp %8 : vector<16x8xf32>
    %cst_4 = arith.constant dense<0.000000e+00> : vector<16xf32>
    %10 = vector.multi_reduction <add>, %9, %cst_4 [1] : vector<16x8xf32> to vector<16xf32>
    %11 = vector.shape_cast %10 : vector<16xf32> to vector<16x1xf32>
    %12 = tpu.iota {dimensions = array<i32: 1>} : vector<16x8xi32>
    %13 = vector.broadcast %4 : vector<16x1xi32> to vector<16x8xi32>
    %14 = arith.cmpi eq, %12, %13 : vector<16x8xi32>
    %cst_5 = arith.constant 0.000000e+00 : f32
    %15 = vector.broadcast %cst_5 : f32 to vector<16x8xf32>
    %16 = arith.select %14, %9, %15 : vector<16x8xi1>, vector<16x8xf32>
    %cst_6 = arith.constant dense<0.000000e+00> : vector<16xf32>
    %17 = vector.multi_reduction <add>, %16, %cst_6 [1] : vector<16x8xf32> to vector<16xf32>
    %18 = vector.shape_cast %17 : vector<16xf32> to vector<16x1xf32>
    %19 = arith.divf %18, %11 : vector<16x1xf32>
    %cst_7 = arith.constant 1.000000e+00 : f32
    %20 = vector.broadcast %cst_7 : f32 to vector<16x1xf32>
    %21 = arith.subf %20, %19 : vector<16x1xf32>
    %22 = arith.mulf %21, %21 : vector<16x1xf32>
    %cst_8 = arith.constant -1.000000e+00 : f32
    %23 = vector.broadcast %cst_8 : f32 to vector<16x1xf32>
    %24 = arith.mulf %23, %22 : vector<16x1xf32>
    %cst_9 = arith.constant 9.99999993E-9 : f32
    %25 = vector.broadcast %cst_9 : f32 to vector<16x1xf32>
    %26 = arith.addf %19, %25 : vector<16x1xf32>
    %27 = math.log %26 : vector<16x1xf32>
    %28 = arith.mulf %24, %27 : vector<16x1xf32>
    %c1_i32 = arith.constant 1 : i32
    %29 = arith.muli %arg0, %c1_i32 : i32
    %30 = arith.addi %29, %arg1 : i32
    %c16_i32 = arith.constant 16 : i32
    %31 = arith.muli %30, %c16_i32 : i32
    %32 = tpu.iota {dimensions = array<i32: 0>} : vector<16x1xi32>
    %33 = vector.broadcast %31 : i32 to vector<16x1xi32>
    %34 = arith.addi %33, %32 : vector<16x1xi32>
    %c16_i32_10 = arith.constant 16 : i32
    %35 = vector.broadcast %c16_i32_10 : i32 to vector<16x1xi32>
    %36 = arith.cmpi slt, %34, %35 : vector<16x1xi32>
    %cst_11 = arith.constant 0.000000e+00 : f32
    %37 = vector.broadcast %cst_11 : f32 to vector<16x1xf32>
    %38 = arith.select %36, %28, %37 : vector<16x1xi1>, vector<16x1xf32>
    %c0_12 = arith.constant 0 : index
    %c0_13 = arith.constant 0 : index
    %39 = vector.load %arg5[%c0_12, %c0_13] : memref<1x1xf32, #tpu.memory_space<vmem>>, vector<1x1xf32>
    %40 = vector.shape_cast %38 : vector<16x1xf32> to vector<1x16x1xf32>
    %cst_14 = arith.constant dense<0.000000e+00> : vector<1xf32>
    %41 = vector.multi_reduction <add>, %40, %cst_14 [1, 2] : vector<1x16x1xf32> to vector<1xf32>
    %42 = vector.shape_cast %41 : vector<1xf32> to vector<1x1x1xf32>
    %43 = vector.extract %42[0, 0, 0] : f32 from vector<1x1x1xf32>
    %44 = vector.broadcast %43 : f32 to vector<1x1xf32>
    %45 = arith.addf %39, %44 : vector<1x1xf32>
    %c0_15 = arith.constant 0 : index
    %c0_16 = arith.constant 0 : index
    %46 = vector.load %arg5[%c0_15, %c0_16] : memref<1x1xf32, #tpu.memory_space<vmem>>, vector<1x1xf32>
    tpu.vector_store %arg5[%c0_15, %c0_16], %45 {strides = array<i32>} : memref<1x1xf32, #tpu.memory_space<vmem>>, vector<1x1xf32>,
    %c0_i32_17 = arith.constant 0 : i32
    %47 = arith.cmpi eq, %arg1, %c0_i32_17 : i32
    %48 = arith.extui %47 : i1 to i32
    %c0_i32_18 = arith.constant 0 : i32
    %49 = arith.cmpi ne, %48, %c0_i32_18 : i32
    scf.if %49 {
      %50 = tpu.iota {dimensions = array<i32: 0>} : vector<8x128xi32>
      %51 = tpu.iota {dimensions = array<i32: 1>} : vector<8x128xi32>
      %c0_i32_19 = arith.constant 0 : i32
      %52 = vector.broadcast %c0_i32_19 : i32 to vector<8x128xi32>
      %53 = arith.cmpi eq, %50, %52 : vector<8x128xi32>
      %c0_i32_20 = arith.constant 0 : i32
      %54 = vector.broadcast %c0_i32_20 : i32 to vector<8x128xi32>
      %55 = arith.cmpi eq, %51, %54 : vector<8x128xi32>
      %56 = arith.andi %53, %55 : vector<8x128xi1>
      %c0_21 = arith.constant 0 : index
      %c0_22 = arith.constant 0 : index
      %57 = vector.load %arg5[%c0_21, %c0_22] : memref<1x1xf32, #tpu.memory_space<vmem>>, vector<1x1xf32>
      %cst_23 = arith.constant 0.000000e+00 : f32
      %58 = vector.shape_cast %57 : vector<1x1xf32> to vector<1x1xf32>
      %59 = vector.broadcast %58 : vector<1x1xf32> to vector<8x128xf32>
      %60 = vector.broadcast %cst_23 : f32 to vector<8x128xf32>
      %61 = arith.select %56, %59, %60 : vector<8x128xi1>, vector<8x128xf32>
      %c0_24 = arith.constant 0 : index
      %c0_25 = arith.constant 0 : index
      %62 = vector.load %arg4[%c0_24, %c0_25] : memref<8x128xf32, #tpu.memory_space<vmem>>, vector<8x128xf32>
      tpu.vector_store %arg4[%c0_24, %c0_25], %61 {strides = array<i32>} : memref<8x128xf32, #tpu.memory_space<vmem>>, vector<8x128xf32>,
    } else {
    }
    return
  }
  func.func @transform_0(%arg0: i32, %arg1: i32) -> (i32, i32) {
    %c1_i32 = arith.constant 1 : i32
    %0 = arith.muli %arg0, %c1_i32 : i32
    %1 = arith.addi %0, %arg1 : i32
    %c0_i32 = arith.constant 0 : i32
    %2 = arith.minsi %1, %c0_i32 : i32
    %c0_i32_0 = arith.constant 0 : i32
    %c0_i32_1 = arith.constant 0 : i32
    return %2, %c0_i32_0 : i32, i32
  }
  func.func @transform_1(%arg0: i32, %arg1: i32) -> (i32, i32) {
    %c1_i32 = arith.constant 1 : i32
    %0 = arith.muli %arg0, %c1_i32 : i32
    %1 = arith.addi %0, %arg1 : i32
    %c0_i32 = arith.constant 0 : i32
    %2 = arith.minsi %1, %c0_i32 : i32
    %c0_i32_0 = arith.constant 0 : i32
    %c0_i32_1 = arith.constant 0 : i32
    return %2, %c0_i32_0 : i32, i32
  }
  func.func @transform_2(%arg0: i32, %arg1: i32) -> (i32, i32) {
    %c0_i32 = arith.constant 0 : i32
    %c0_i32_0 = arith.constant 0 : i32
    return %c0_i32, %arg0 : i32, i32
  }
}

</mosaic_0001>

<llo_original>
// kernel: tpu_custom_call.1
$region0: #{tpu_custom_call.1}
  #allocation0 [shape = 'u32[]', space=smem, size = 0x4, offset = 0x4, fixed_abs, tag = 'smem constant byte address 0x4 - core index']
  #allocation1 [shape = 'u32[72,128]{1,0:T(1,128)}', space=vmem, size = 0x9000, scoped, tag = 'internal scratch']
  #allocation2 [shape = 'f32[1,1]{1,0:T(1,128)}', space=vmem, size = 0x200, scoped, tag = 'scratch operand']
  %s0 = inlined_call_operand.vmem [shape: f32[16,8], index: 0, kind: input, shape index: {}]
  %s1 = inlined_call_operand.vmem [shape: s32[16,1], index: 1, kind: input, shape index: {}]
  %s2 = inlined_call_operand.hbm [shape: f32[8,128], index: 2, kind: output, shape index: {}]
  %s3 = sld [smem:[#allocation0]]
  $region26: #{tpu_custom_call.1} parent=0
    _
  %s5 = ssub.s32 1, %s3
  %s6 = scalar_select 0, %s5, %s3
  $region1: #{tpu_custom_call.1} parent=0
    #allocation3 [shape = 'u8[4096]{0}', space=vmem, size = 0x1000, scoped, tag = 'output window, operand 0, single buffered']
    #allocation4 [shape = 's32[1]{0}', space=sflag, size = 0x4, scoped, tag = 'scoped memory for tpu_custom_call.1']
    %7 = vsyncpa [#allocation4], 0
    // Predicated region
    $region2: #{tpu_custom_call.1} parent=1 // pred_check
      _
    $region3: #{tpu_custom_call.1} parent=1 // pred_check_branch
      %9 = sbr.rel (0) target = $region5
    $region4: #{tpu_custom_call.1} parent=1 // pred_region
      %s10 = sadd.s32 0, 0
      %p11 = scmp.lt.s32.totalorder %s10, 0
      %s12 = scalar_select %p11, %s10, 0
      %s13 = smul.u32 2, %s12
      %p14 = scmp.lt.s32.totalorder %s13, 1
      %s15 = scalar_select %p14, %s13, 1
      %s16 = smul.addr %s15, 8
      %s17 = scalar_lea.vmem %s0, %s16
      %s18 = sadd.s32 0, 0
      %p19 = scmp.lt.s32.totalorder %s18, 0
      %s20 = scalar_select %p19, %s18, 0
      %s21 = smul.u32 2, %s20
    $region5: #{tpu_custom_call.1} parent=1 // pred_fallthru
      _
    // Predicated region
    $region6: #{tpu_custom_call.1} parent=1 // pred_check
      _
    $region7: #{tpu_custom_call.1} parent=1 // pred_check_branch
      %23 = sbr.rel (0) target = $region9
    $region8: #{tpu_custom_call.1} parent=1 // pred_region
      %s24 = sadd.s32 0, 0
      %p25 = scmp.lt.s32.totalorder %s24, 0
      %s26 = scalar_select %p25, %s24, 0
      %s27 = smul.u32 2, %s26
      %p28 = scmp.lt.s32.totalorder %s27, 1
      %s29 = scalar_select %p28, %s27, 1
      %s30 = smul.addr %s29, 8
      %s31 = scalar_lea.vmem %s1, %s30
      %s32 = sadd.s32 0, 0
      %p33 = scmp.lt.s32.totalorder %s32, 0
      %s34 = scalar_select %p33, %s32, 0
      %s35 = smul.u32 2, %s34
    $region9: #{tpu_custom_call.1} parent=1 // pred_fallthru
      _
    %s36 = sadd.s32 0, 0
    %p37 = scmp.lt.s32.totalorder %s36, 0
    %s38 = scalar_select %p37, %s36, 0
    %s39 = smul.u32 2, %s38
    %p40 = scmp.lt.s32.totalorder %s39, 1
    %s41 = scalar_select %p40, %s39, 1
    %s42 = smul.addr %s41, 8
    %s43 = scalar_lea.vmem %s0, %s42
    %s44 = sadd.s32 0, 0
    %p45 = scmp.lt.s32.totalorder %s44, 0
    %s46 = scalar_select %p45, %s44, 0
    %s47 = smul.u32 2, %s46
    %p48 = scmp.lt.s32.totalorder %s47, 1
    %s49 = scalar_select %p48, %s47, 1
    %s50 = smul.addr %s49, 8
    %s51 = scalar_lea.vmem %s1, %s50
    %s52 = sadd.s32 0, 0
    %p53 = scmp.lt.s32.totalorder %s52, 0
    %s54 = scalar_select %p53, %s52, 0
    %s55 = smul.u32 2, %s54
    %p56 = scmp.lt.s32.totalorder %s55, 1
    %s57 = scalar_select %p56, %s55, 1
    %s58 = smul.addr %s57, 8
    %s59 = scalar_lea.vmem %s0, %s58
    %s60 = sadd.s32 0, 0
    %p61 = scmp.lt.s32.totalorder %s60, 0
    %s62 = scalar_select %p61, %s60, 0
    %s63 = smul.u32 2, %s62
    %s64 = sadd.s32 0, 0
    %p65 = scmp.lt.s32.totalorder %s64, 0
    %s66 = scalar_select %p65, %s64, 0
    %s67 = smul.u32 2, %s66
    %p68 = scmp.lt.s32.totalorder %s67, 1
    %s69 = scalar_select %p68, %s67, 1
    %s70 = smul.addr %s69, 8
    %s71 = scalar_lea.vmem %s1, %s70
    %s72 = sadd.s32 0, 0
    %p73 = scmp.lt.s32.totalorder %s72, 0
    %s74 = scalar_select %p73, %s72, 0
    %s75 = smul.u32 2, %s74
    %p76 = scmp.eq.s32.totalorder 0, 0
    // Predicated region
    $region10: #{tpu_custom_call.1} parent=1 // pred_check
      %p77 = pneg %p76
    $region11: #{tpu_custom_call.1} parent=1 // pred_check_branch
      %79 = sbr.rel (%p77) target = $region13
    $region12: #{tpu_custom_call.1} parent=1 // pred_region
      %vm80 = vcmask 0
      %81 = vst.msk [vmem:[#allocation2] sm:$0x1] %vm80, 0.0
    $region13: #{tpu_custom_call.1} parent=1 // pred_fallthru
      _
    %v82 = vld [vmem:[%s59] sm:$0xff]
    %v83 = vld [vmem:[%s59 + $0x8] sm:$0xff]
    %v84 = vld [vmem:[%s71] sm:$0xff]
    %v85 = vld [vmem:[%s71 + $0x8] sm:$0xff]
    %vm86 = vcmask 64512
    %v87 = vsel %vm86, %v82, -inf
    %88 = vmax.xlane.f32.xlu0 %v87
    %v89 = vpop.xlane.xlu0 %88
    %v90 = vsel %vm86, %v83, -inf
    %91 = vmax.xlane.f32.xlu0 %v90
    %v92 = vpop.xlane.xlu0 %91
    %v93 = vsub.f32 %v82, %v89
    %v94 = vsub.f32 %v83, %v92
    %v95 = vmul.f32 %v93, 1.442695
    %v96 = vpow.pop %v95
    %v97 = vmul.f32 %v94, 1.442695
    %v98 = vpow.pop %v97
    %v99 = vsel %vm86, %v96, 0.0
    %100 = vadd.xlane.f32.xlu0 %v99
    %v101 = vpop.xlane.xlu0 %100
    %v102 = vsel %vm86, %v98, 0.0
    %103 = vadd.xlane.f32.xlu0 %v102
    %v104 = vpop.xlane.xlu0 %103
    %v105 = vlaneseq
    %v106 = vand.u32 %v105, 127
    %107 = vset.pattern.permute.xlu0 0
    %108 = vperm.xlu0 %107, %v84
    %v109 = vpop.permute.xlu0 %108
    %110 = vset.pattern.permute.xlu0 0
    %111 = vperm.xlu0 %110, %v85
    %v112 = vpop.permute.xlu0 %111
    %vm113 = vcmp.eq.s32.totalorder %v106, %v109
    %vm114 = vcmp.eq.s32.totalorder %v106, %v112
    %v115 = vsel %vm113, %v96, 0.0
    %v116 = vsel %vm114, %v98, 0.0
    %v117 = vsel %vm86, %v115, 0.0
    %118 = vadd.xlane.f32.xlu0 %v117
    %v119 = vpop.xlane.xlu0 %118
    %v120 = vsel %vm86, %v116, 0.0
    %121 = vadd.xlane.f32.xlu0 %v120
    %v122 = vpop.xlane.xlu0 %121
    %v123 = vrcp.pop %v101
    %v124 = vmul.f32 %v101, %v123
    %v125 = vsub.f32 1.0, %v124
    %v126 = vmul.f32 %v123, %v125
    %v127 = vadd.f32 %v123, %v126
    %vm128 = vweird.f32 %v101
    %vm129 = vweird.f32 %v123
    %vm130 = vmor %vm128, %vm129
    %v131 = vsel %vm130, %v123, %v127
    %v132 = vand.u32 2147483647, %v101
    %vm133 = vcmp.eq.f32.partialorder %v132, 8.507059e+37
    %v134 = vand.u32 %v101, 2147483648
    %v135 = vor.u32 1.1754944e-38, %v134
    %v136 = vsel %vm133, %v135, %v131
    %v137 = vmul.f32 %v119, %v136
    %v138 = vrcp.pop %v104
    %v139 = vmul.f32 %v104, %v138
    %v140 = vsub.f32 1.0, %v139
    %v141 = vmul.f32 %v138, %v140
    %v142 = vadd.f32 %v138, %v141
    %vm143 = vweird.f32 %v104
    %vm144 = vweird.f32 %v138
    %vm145 = vmor %vm143, %vm144
    %v146 = vsel %vm145, %v138, %v142
    %v147 = vand.u32 2147483647, %v104
    %vm148 = vcmp.eq.f32.partialorder %v147, 8.507059e+37
    %v149 = vand.u32 %v104, 2147483648
    %v150 = vor.u32 1.1754944e-38, %v149
    %v151 = vsel %vm148, %v150, %v146
    %v152 = vmul.f32 %v122, %v151
    %v153 = vsub.f32 1.0, %v137
    %v154 = vsub.f32 1.0, %v152
    %v155 = vmul.f32 %v153, %v153
    %v156 = vmul.f32 %v154, %v154
    %v157 = vmul.f32 %v155, -1.0
    %v158 = vmul.f32 %v156, -1.0
    %v159 = vadd.f32 %v137, 1e-08
    %v160 = vadd.f32 %v152, 1e-08
    %v161 = vlog2.pop %v159
    %v162 = vmul.f32 %v161, 0.6931472
    %v163 = vlog2.pop %v160
    %v164 = vmul.f32 %v163, 0.6931472
    %v165 = vmul.f32 %v157, %v162
    %v166 = vmul.f32 %v158, %v164
    %s167 = sadd.s32 0, 0
    %s168 = smul.u32 %s167, 16
    %v169 = vlaneseq
    %v170 = vshrl.u32 %v169, 7
    %v171 = vadd.s32 %v170, 8
    %v172 = vstv %s168
    %v173 = vadd.s32 %v172, %v170
    %v174 = vadd.s32 %v172, %v171
    %vm175 = vcmp.lt.s32.totalorder %v173, 16
    %vm176 = vcmp.lt.s32.totalorder %v174, 16
    %v177 = vsel %vm175, %v165, 0.0
    %v178 = vsel %vm176, %v166, 0.0
    %v179 = vld [vmem:[#allocation2] sm:$0x1]
    %vm180 = vcmask 7168
    %v181 = vsel %vm180, %v177, 0.0
    %v182 = vsel %vm180, %v178, 0.0
    %v183 = vadd.f32 %v181, %v182
    %184 = vadd.xlane.f32.xlu0 %v183
    %v185 = vpop.xlane.xlu0 %184
    %v186 = vrot.slane %v185, 4
    %v187 = vadd.f32 %v185, %v186
    %v188 = vrot.slane %v187, 2
    %v189 = vadd.f32 %v187, %v188
    %v190 = vrot.slane %v189, 1
    %v191 = vadd.f32 %v189, %v190
    %s192 = vtos %v191
    %v193 = vstv %s192
    %v194 = vadd.f32 %v179, %v193
    %vm195 = vcmask 0
    %196 = vst.msk [vmem:[#allocation2] sm:$0x1] %vm195, %v194
    // Predicated region
    $region14: #{tpu_custom_call.1} parent=1 // pred_check
      %p197 = pneg %p76
    $region15: #{tpu_custom_call.1} parent=1 // pred_check_branch
      %199 = sbr.rel (%p197) target = $region17
    $region16: #{tpu_custom_call.1} parent=1 // pred_region
      %vm200 = vcmp.eq.s32.totalorder %v170, 0
      %vm201 = vcmp.eq.s32.totalorder %v106, 0
      %vm202 = vmand %vm200, %vm201
      %v203 = vld [vmem:[#allocation2] sm:$0x1]
      %v205 = vperm.slane %v203, 0
      %206 = vset.pattern.permute.xlu0 0
      %207 = vperm.xlu0 %206, %v205
      %v208 = vpop.permute.xlu0 %207
      %v210 = vsel %vm202, %v208, 0.0
      %211 = vst [vmem:[#allocation3] sm:$0xff] %v210
    $region17: #{tpu_custom_call.1} parent=1 // pred_fallthru
      _
    // Predicated region
    $region18: #{tpu_custom_call.1} parent=1 // pred_check
      _
    $region19: #{tpu_custom_call.1} parent=1 // pred_check_branch
      %213 = sbr.rel (0) target = $region21
    $region20: #{tpu_custom_call.1} parent=1 // pred_region
      %215 = vsyncadd [#allocation4], 0
      %s217 = sshll.u32 [#allocation3], 4
      %s218 = int_to_ptr.vmem [resolvable:$true] %s217
      %s219 = sshll.u32 %s2, 4
      %s220 = int_to_ptr.hbm [resolvable:$true] %s219
      %222 = dma.vmem_to_hbm [thread:$0]  %s218, 128, %s220, [#allocation4]
    $region21: #{tpu_custom_call.1} parent=1 // pred_fallthru
      _
    // Predicated region
    $region22: #{tpu_custom_call.1} parent=1 // pred_check
      _
    $region23: #{tpu_custom_call.1} parent=1 // pred_check_branch
      %224 = sbr.rel (0) target = $region25
    $region24: #{tpu_custom_call.1} parent=1 // pred_region
      %226 = dma.done [#allocation4], 128
    $region25: #{tpu_custom_call.1} parent=1 // pred_fallthru
      _
    %227 = vsyncpa [#allocation4], 1

</llo_original>
